<compile_context>
chip_gen: v7x
topology: tpu7x:2x2x1
jax: 0.10.0
libtpu: 0.0.40
codegen_flags: <defaults>
</compile_context>

<pallas_src>
import functools
import math

import numpy as np
import jax
import jax.numpy as jnp
from jax.experimental import pallas as pl
from jax.experimental.pallas import tpu as pltpu

# torch.log(torch.tensor(1e-45)) -> log of the float32 denormal 1.4012985e-45.
# Computed on host (TPU flushes denormals to zero, so do NOT compute it on-device).
_NEG_FILL = float(np.log(np.float32(1e-45)))  # ~ -103.27893


def _pick_bt(B, S, H):
    """Batch-tile size: multiple of 8 (or full B when B < 8), ~2048 flattened
    matmul rows per step, f32 encoder tile capped at 2 MiB, >=2 tiles when
    B >= 16 (v7x megacore sharding)."""
    if B <= 8:
        return B                                   # full-dim block satisfies (8,128) rule
    rows_target = 2048
    bt = max(1, rows_target // max(S, 1))
    enc_tile_cap = 2 << 20                         # bytes of the f32 encoder tile / step
    bt = min(bt, max(1, enc_tile_cap // (S * H * 4)))
    bt = max(8, (bt // 8) * 8)                     # sublane-dense 2-D blocks want bt % 8 == 0
    bt = min(bt, (B // 8) * 8)                     # block must not exceed the batch
    if B >= 16:                                    # keep >= 2 grid steps for v7x's 2 TCs
        bt = min(bt, max(8, ((B // 2) // 8) * 8))
    return bt


def _attention_kernel(dec_ref, enc_ref, mask_ref, w1t_ref, w2t_ref, vt_ref,
                      out_ref, *, alpha, c, neg_fill):
    # Per-tile blocks:
    #   dec_ref  : (bt, H)        enc_ref : (bt*S, H)  (batch flattened into M)
    #   mask_ref : (bt, S) int32  w1t/w2t : (H, H) pre-transposed
    #   vt_ref   : (1, H)         out_ref : (bt, S)
    bt, s = out_ref.shape
    h = w1t_ref.shape[0]

    # --- Linear transforms: plain 2-D MXU matmuls ------------------------------
    enc_t = jnp.dot(enc_ref[...], w1t_ref[...],
                    preferred_element_type=jnp.float32)            # (bt*S, H)
    # alpha applied to the activations keeps rounding identical to the reference
    # (decoder_state * alpha) @ W2.T.
    dec_t = jnp.dot(dec_ref[...] * jnp.float32(alpha), w2t_ref[...],
                    preferred_element_type=jnp.float32)            # (bt, H)

    # --- tanh + vt projection (VPU multiply + lane reduce, MXU not needed) -----
    # reshape is a pure view when S % 8 == 0 (sublane tiling unchanged).
    hid = jnp.tanh(enc_t.reshape(bt, s, h) + dec_t[:, None, :])    # (bt, S, H)
    u = jnp.sum(hid * vt_ref[...], axis=-1)                        # (bt, S)

    # --- mask, exploration scale, numerically stable softmax over S ------------
    score = jnp.where(mask_ref[...] != 0, u, jnp.float32(neg_fill)) * jnp.float32(c)
    score_max = jnp.max(score, axis=-1, keepdims=True)
    e = jnp.exp(score - score_max)
    denom = jnp.sum(e, axis=-1, keepdims=True)
    out_ref[...] = e * pl.reciprocal(denom, approx=False)          # dense 2-D store


def attention_forward(decoder_state, encoder_outputs, mask, W1, W2, vt,
                      exploration_c=10.0, user_scale_alpha=0.05):
    """decoder_state (B,1,H), encoder_outputs (B,S,H), mask (B,S) bool -> prob (B,S)."""
    B, S, H = encoder_outputs.shape
    f32 = jnp.float32

    bt = _pick_bt(B, S, H)
    num_tiles = pl.cdiv(B, bt)

    # Cheap / free wrapper-side layout prep (no pass over the big tensor):
    enc_flat = encoder_outputs.astype(f32).reshape(B * S, H)   # contiguous -> view
    dec2d = decoder_state.astype(f32).reshape(B, H)
    mask_i = mask.astype(jnp.int32)                            # (B, S), tiny
    # Pre-transpose weights once (PyTorch Linear: x @ W.T) -> no in-kernel transpose.
    W1t = W1.astype(f32).T
    W2t = W2.astype(f32).T
    vt2 = vt.astype(f32).reshape(1, H)

    kernel = functools.partial(_attention_kernel,
                               alpha=float(user_scale_alpha),
                               c=float(exploration_c),
                               neg_fill=_NEG_FILL)

    out = pl.pallas_call(
        kernel,
        out_shape=jax.ShapeDtypeStruct((B, S), f32),
        grid=(num_tiles,),
        in_specs=[
            pl.BlockSpec((bt, H),     lambda i: (i, 0)),   # decoder rows
            pl.BlockSpec((bt * S, H), lambda i: (i, 0)),   # encoder rows (flattened)
            pl.BlockSpec((bt, S),     lambda i: (i, 0)),   # mask (int32)
            pl.BlockSpec((H, H),      lambda i: (0, 0)),   # W1^T (constant across grid)
            pl.BlockSpec((H, H),      lambda i: (0, 0)),   # W2^T
            pl.BlockSpec((1, H),      lambda i: (0, 0)),   # vt
        ],
        out_specs=pl.BlockSpec((bt, S), lambda i: (i, 0)),
        compiler_params=pltpu.CompilerParams(
            dimension_semantics=("parallel",),
            vmem_limit_bytes=32 * 1024 * 1024),
    )(dec2d, enc_flat, mask_i, W1t, W2t, vt2)

    return out


def _reference_forward(decoder_state, encoder_outputs, mask, W1, W2, vt,
                       exploration_c=10.0, user_scale_alpha=0.05):
    enc_t = encoder_outputs @ W1.T
    dec_t = (decoder_state * user_scale_alpha) @ W2.T
    # vt Linear(H->1, no bias) == reduce over H (same math as the module).
    u = jnp.sum(jnp.tanh(enc_t + dec_t) * vt.reshape(-1), axis=-1)
    score = jnp.where(mask, u, jnp.float32(_NEG_FILL)) * exploration_c
    return jax.nn.softmax(score, axis=-1)


if __name__ == "__main__":
    B, S, H = 2, 8, 32

    key = jax.random.PRNGKey(0)
    k_dec, k_enc, k_w1, k_w2, k_vt = jax.random.split(key, 5)

    # Deterministic "parameter" init mimicking nn.Linear's U(-1/sqrt(H), 1/sqrt(H)).
    bound = 1.0 / math.sqrt(H)
    W1 = jax.random.uniform(k_w1, (H, H), jnp.float32, -bound, bound)
    W2 = jax.random.uniform(k_w2, (H, H), jnp.float32, -bound, bound)
    vt = jax.random.uniform(k_vt, (1, H), jnp.float32, -bound, bound)

    decoder_state = jax.random.normal(k_dec, (B, 1, H), jnp.float32)
    encoder_outputs = jax.random.normal(k_enc, (B, S, H), jnp.float32)
    # Mask out the tail of each sequence (ragged lengths), dtype bool like PyTorch.
    lengths = jnp.array([S, S - 3], dtype=jnp.int32)
    mask = (jnp.arange(S)[None, :] < lengths[:, None])   # (B, S) bool

    prob = attention_forward(decoder_state, encoder_outputs, mask, W1, W2, vt)
    prob = jax.block_until_ready(prob)

    ref = _reference_forward(decoder_state, encoder_outputs, mask, W1, W2, vt)
    assert prob.shape == (B, S)
    assert bool(jnp.allclose(prob, ref, atol=2e-5, rtol=2e-5)), "mismatch vs reference"
    assert bool(jnp.allclose(jnp.sum(prob, axis=-1), 1.0, atol=1e-5)), "rows not normalized"

    print("KERNEL_OK")
</pallas_src>

<mosaic_0001>
module attributes {stable_mosaic.version = 11 : i64} {
  func.func @_attention_kernel(%arg0: i32, %arg1: memref<2x32xf32, #tpu.memory_space<vmem>>, %arg2: memref<16x32xf32, #tpu.memory_space<vmem>>, %arg3: memref<2x8xi32, #tpu.memory_space<vmem>>, %arg4: memref<32x32xf32, #tpu.memory_space<vmem>>, %arg5: memref<32x32xf32, #tpu.memory_space<vmem>>, %arg6: memref<1x32xf32, #tpu.memory_space<vmem>>, %arg7: memref<2x8xf32, #tpu.memory_space<vmem>>) attributes {dimension_semantics = [#tpu.dimension_semantics<parallel>], iteration_bounds = array<i64: 1>, scalar_prefetch = 0 : i64, scratch_operands = 0 : i64, tpu.core_type = #tpu.core_type<tc>, window_params = [{transform_indices = @transform_0, window_bounds = array<i64: 2, 32>}, {transform_indices = @transform_1, window_bounds = array<i64: 16, 32>}, {transform_indices = @transform_2, window_bounds = array<i64: 2, 8>}, {pipeline_mode = #tpu.pipeline_mode<synchronous>, transform_indices = @transform_3, window_bounds = array<i64: 32, 32>}, {pipeline_mode = #tpu.pipeline_mode<synchronous>, transform_indices = @transform_4, window_bounds = array<i64: 32, 32>}, {pipeline_mode = #tpu.pipeline_mode<synchronous>, transform_indices = @transform_5, window_bounds = array<i64: 1, 32>}, {transform_indices = @transform_6, window_bounds = array<i64: 2, 8>}]} {
    %c0 = arith.constant 0 : index
    %c0_0 = arith.constant 0 : index
    %0 = vector.load %arg2[%c0, %c0_0] : memref<16x32xf32, #tpu.memory_space<vmem>>, vector<16x32xf32>
    %c0_1 = arith.constant 0 : index
    %c0_2 = arith.constant 0 : index
    %1 = vector.load %arg4[%c0_1, %c0_2] : memref<32x32xf32, #tpu.memory_space<vmem>>, vector<32x32xf32>
    %cst = arith.constant dense<0.000000e+00> : vector<16x32xf32>
    %2 = tpu.matmul %0, %1, %cst {dimension_numbers = #tpu.dot_dimension_numbers<[1], [0], [0], [1], [0, 0, 1, 1], [], []>} : vector<16x32xf32>, vector<32x32xf32>, vector<16x32xf32> -> vector<16x32xf32>
    %c0_3 = arith.constant 0 : index
    %c0_4 = arith.constant 0 : index
    %3 = vector.load %arg1[%c0_3, %c0_4] : memref<2x32xf32, #tpu.memory_space<vmem>>, vector<2x32xf32>
    %cst_5 = arith.constant 5.000000e-02 : f32
    %4 = vector.broadcast %cst_5 : f32 to vector<2x32xf32>
    %5 = arith.mulf %3, %4 : vector<2x32xf32>
    %c0_6 = arith.constant 0 : index
    %c0_7 = arith.constant 0 : index
    %6 = vector.load %arg5[%c0_6, %c0_7] : memref<32x32xf32, #tpu.memory_space<vmem>>, vector<32x32xf32>
    %cst_8 = arith.constant dense<0.000000e+00> : vector<2x32xf32>
    %7 = tpu.matmul %5, %6, %cst_8 {dimension_numbers = #tpu.dot_dimension_numbers<[1], [0], [0], [1], [0, 0, 1, 1], [], []>} : vector<2x32xf32>, vector<32x32xf32>, vector<2x32xf32> -> vector<2x32xf32>
    %8 = vector.shape_cast %2 : vector<16x32xf32> to vector<2x8x32xf32>
    %9 = vector.shape_cast %7 : vector<2x32xf32> to vector<2x1x32xf32>
    %10 = vector.broadcast %9 : vector<2x1x32xf32> to vector<2x8x32xf32>
    %11 = arith.addf %8, %10 : vector<2x8x32xf32>
    %12 = math.tanh %11 : vector<2x8x32xf32>
    %c0_9 = arith.constant 0 : index
    %c0_10 = arith.constant 0 : index
    %13 = vector.load %arg6[%c0_9, %c0_10] : memref<1x32xf32, #tpu.memory_space<vmem>>, vector<1x32xf32>
    %14 = vector.shape_cast %13 : vector<1x32xf32> to vector<1x1x32xf32>
    %15 = vector.broadcast %14 : vector<1x1x32xf32> to vector<2x8x32xf32>
    %16 = arith.mulf %12, %15 : vector<2x8x32xf32>
    %cst_11 = arith.constant dense<0.000000e+00> : vector<2x8xf32>
    %17 = vector.multi_reduction <add>, %16, %cst_11 [2] : vector<2x8x32xf32> to vector<2x8xf32>
    %c0_12 = arith.constant 0 : index
    %c0_13 = arith.constant 0 : index
    %18 = vector.load %arg3[%c0_12, %c0_13] : memref<2x8xi32, #tpu.memory_space<vmem>>, vector<2x8xi32>
    %c0_i32 = arith.constant 0 : i32
    %19 = vector.broadcast %c0_i32 : i32 to vector<2x8xi32>
    %20 = arith.cmpi ne, %18, %19 : vector<2x8xi32>
    %cst_14 = arith.constant -103.278931 : f32
    %21 = vector.broadcast %cst_14 : f32 to vector<2x8xf32>
    %22 = arith.select %20, %17, %21 : vector<2x8xi1>, vector<2x8xf32>
    %cst_15 = arith.constant 1.000000e+01 : f32
    %23 = vector.broadcast %cst_15 : f32 to vector<2x8xf32>
    %24 = arith.mulf %22, %23 : vector<2x8xf32>
    %cst_16 = arith.constant dense<0xFF800000> : vector<2xf32>
    %25 = vector.multi_reduction <maximumf>, %24, %cst_16 [1] : vector<2x8xf32> to vector<2xf32>
    %26 = vector.shape_cast %25 : vector<2xf32> to vector<2x1xf32>
    %27 = vector.broadcast %26 : vector<2x1xf32> to vector<2x8xf32>
    %28 = arith.subf %24, %27 : vector<2x8xf32>
    %29 = math.exp %28 : vector<2x8xf32>
    %cst_17 = arith.constant dense<0.000000e+00> : vector<2xf32>
    %30 = vector.multi_reduction <add>, %29, %cst_17 [1] : vector<2x8xf32> to vector<2xf32>
    %31 = vector.shape_cast %30 : vector<2xf32> to vector<2x1xf32>
    %32 = tpu.reciprocal %31 : vector<2x1xf32> -> vector<2x1xf32>
    %33 = vector.broadcast %32 : vector<2x1xf32> to vector<2x8xf32>
    %34 = arith.mulf %29, %33 : vector<2x8xf32>
    %c0_18 = arith.constant 0 : index
    %c0_19 = arith.constant 0 : index
    %35 = vector.load %arg7[%c0_18, %c0_19] : memref<2x8xf32, #tpu.memory_space<vmem>>, vector<2x8xf32>
    tpu.vector_store %arg7[%c0_18, %c0_19], %34 {strides = array<i32>} : memref<2x8xf32, #tpu.memory_space<vmem>>, vector<2x8xf32>,
    return
  }
  func.func @transform_0(%arg0: i32) -> (i32, i32) {
    %c0_i32 = arith.constant 0 : i32
    %c0_i32_0 = arith.constant 0 : i32
    return %arg0, %c0_i32 : i32, i32
  }
  func.func @transform_1(%arg0: i32) -> (i32, i32) {
    %c0_i32 = arith.constant 0 : i32
    %c0_i32_0 = arith.constant 0 : i32
    return %arg0, %c0_i32 : i32, i32
  }
  func.func @transform_2(%arg0: i32) -> (i32, i32) {
    %c0_i32 = arith.constant 0 : i32
    %c0_i32_0 = arith.constant 0 : i32
    return %arg0, %c0_i32 : i32, i32
  }
  func.func @transform_3(%arg0: i32) -> (i32, i32) {
    %c0_i32 = arith.constant 0 : i32
    %c0_i32_0 = arith.constant 0 : i32
    %c0_i32_1 = arith.constant 0 : i32
    return %c0_i32, %c0_i32_0 : i32, i32
  }
  func.func @transform_4(%arg0: i32) -> (i32, i32) {
    %c0_i32 = arith.constant 0 : i32
    %c0_i32_0 = arith.constant 0 : i32
    %c0_i32_1 = arith.constant 0 : i32
    return %c0_i32, %c0_i32_0 : i32, i32
  }
  func.func @transform_5(%arg0: i32) -> (i32, i32) {
    %c0_i32 = arith.constant 0 : i32
    %c0_i32_0 = arith.constant 0 : i32
    %c0_i32_1 = arith.constant 0 : i32
    return %c0_i32, %c0_i32_0 : i32, i32
  }
  func.func @transform_6(%arg0: i32) -> (i32, i32) {
    %c0_i32 = arith.constant 0 : i32
    %c0_i32_0 = arith.constant 0 : i32
    return %arg0, %c0_i32 : i32, i32
  }
}

</mosaic_0001>

<llo_original>
// kernel: tpu_custom_call.1
$region0: #{tpu_custom_call.1}
  #allocation0 [shape = 'u32[]', space=smem, size = 0x4, offset = 0x4, fixed_abs, tag = 'smem constant byte address 0x4 - core index']
  #allocation1 [shape = 'u32[144,128]{1,0:T(1,128)}', space=vmem, size = 0x12000, scoped, tag = 'internal scratch']
  %s0 = inlined_call_operand.hbm [shape: f32[2,32], index: 0, kind: input, shape index: {}]
  %s1 = inlined_call_operand.hbm [shape: f32[16,32], index: 1, kind: input, shape index: {}]
  %s2 = inlined_call_operand.vmem [shape: s32[2,8], index: 2, kind: input, shape index: {}]
  %s3 = inlined_call_operand.hbm [shape: f32[32,32], index: 3, kind: input, shape index: {}]
  %s4 = inlined_call_operand.hbm [shape: f32[32,32], index: 4, kind: input, shape index: {}]
  %s5 = inlined_call_operand.vmem [shape: f32[1,32], index: 5, kind: input, shape index: {}]
  %s6 = inlined_call_operand.hbm [shape: f32[2,8], index: 6, kind: output, shape index: {}]
  %s7 = sld [smem:[#allocation0]]
  $region50: #{tpu_custom_call.1} parent=0
    _
  %s9 = ssub.s32 1, %s7
  %s10 = scalar_select 0, %s9, %s7
  $region1: #{tpu_custom_call.1} parent=0
    #allocation2 [shape = 'u8[1024]{0}', space=vmem, size = 0x400, scoped, tag = 'input window, operand 0, single buffered']
    #allocation3 [shape = 's32[1]{0}', space=sflag, size = 0x4, scoped, tag = 'scoped memory for tpu_custom_call.1']
    #allocation4 [shape = 's32[1]{0}', space=sflag, size = 0x4, scoped, tag = 'scoped memory for tpu_custom_call.1']
    #allocation5 [shape = 'u8[8192]{0}', space=vmem, size = 0x2000, scoped, tag = 'input window, operand 1, single buffered']
    #allocation6 [shape = 's32[1]{0}', space=sflag, size = 0x4, scoped, tag = 'scoped memory for tpu_custom_call.1']
    #allocation7 [shape = 'u8[16384]{0}', space=vmem, size = 0x4000, scoped, tag = 'input window, operand 3, single buffered']
    #allocation8 [shape = 'u8[16384]{0}', space=vmem, size = 0x4000, scoped, tag = 'input window, operand 4, single buffered']
    #allocation9 [shape = 's32[1]{0}', space=sflag, size = 0x4, scoped, tag = 'scoped memory for tpu_custom_call.1']
    #allocation10 [shape = 'u8[1024]{0}', space=vmem, size = 0x400, scoped, tag = 'output window, operand 0, single buffered']
    %11 = vsyncpa [#allocation3], 0
    %12 = vsyncpa [#allocation6], 0
    %13 = vsyncpa [#allocation9], 0
    %14 = vsyncpa [#allocation4], 0
    // Predicated region
    $region2: #{tpu_custom_call.1} parent=1 // pred_check
      _
    $region3: #{tpu_custom_call.1} parent=1 // pred_check_branch
      %16 = sbr.rel (0) target = $region5
    $region4: #{tpu_custom_call.1} parent=1 // pred_region
      %s18 = ssub.s32 32, 32
      %19 = vsyncadd [#allocation3], %s18
      %s21 = sshll.u32 [#allocation2], 4
      %s22 = int_to_ptr.vmem [resolvable:$true] %s21
      %24 = dma.hbm_to_vmem [thread:$0]  %s0, 32, %s22, [#allocation3]
    $region5: #{tpu_custom_call.1} parent=1 // pred_fallthru
      _
    // Predicated region
    $region6: #{tpu_custom_call.1} parent=1 // pred_check
      _
    $region7: #{tpu_custom_call.1} parent=1 // pred_check_branch
      %26 = sbr.rel (0) target = $region9
    $region8: #{tpu_custom_call.1} parent=1 // pred_region
      %s28 = ssub.s32 256, 256
      %29 = vsyncadd [#allocation6], %s28
      %s30 = sshll.u32 [#allocation5], 4
      %s31 = int_to_ptr.vmem [resolvable:$true] %s30
      %36 = dma.hbm_to_vmem [thread:$0]  %s1, 256, %s31, [#allocation6], 128, 128, 8
    $region9: #{tpu_custom_call.1} parent=1 // pred_fallthru
      _
    // Predicated region
    $region10: #{tpu_custom_call.1} parent=1 // pred_check
      _
    $region11: #{tpu_custom_call.1} parent=1 // pred_check_branch
      %38 = sbr.rel (0) target = $region13
    $region12: #{tpu_custom_call.1} parent=1 // pred_region
      _
    $region13: #{tpu_custom_call.1} parent=1 // pred_fallthru
      _
    // Predicated region
    $region14: #{tpu_custom_call.1} parent=1 // pred_check
      _
    $region15: #{tpu_custom_call.1} parent=1 // pred_check_branch
      %40 = sbr.rel (0) target = $region17
    $region16: #{tpu_custom_call.1} parent=1 // pred_region
      %s42 = ssub.s32 512, 512
      %43 = vsyncadd [#allocation6], %s42
      %s44 = sshll.u32 [#allocation7], 4
      %s45 = int_to_ptr.vmem [resolvable:$true] %s44
      %50 = dma.hbm_to_vmem [thread:$0]  %s3, 512, %s45, [#allocation6], 128, 128, 8
    $region17: #{tpu_custom_call.1} parent=1 // pred_fallthru
      _
    // Predicated region
    $region18: #{tpu_custom_call.1} parent=1 // pred_check
      _
    $region19: #{tpu_custom_call.1} parent=1 // pred_check_branch
      %52 = sbr.rel (0) target = $region21
    $region20: #{tpu_custom_call.1} parent=1 // pred_region
      %s54 = ssub.s32 512, 512
      %55 = vsyncadd [#allocation9], %s54
      %s56 = sshll.u32 [#allocation8], 4
      %s57 = int_to_ptr.vmem [resolvable:$true] %s56
      %62 = dma.hbm_to_vmem [thread:$0]  %s4, 512, %s57, [#allocation9], 128, 128, 8
    $region21: #{tpu_custom_call.1} parent=1 // pred_fallthru
      _
    // Predicated region
    $region22: #{tpu_custom_call.1} parent=1 // pred_check
      _
    $region23: #{tpu_custom_call.1} parent=1 // pred_check_branch
      %64 = sbr.rel (0) target = $region25
    $region24: #{tpu_custom_call.1} parent=1 // pred_region
      _
    $region25: #{tpu_custom_call.1} parent=1 // pred_fallthru
      _
    // Predicated region
    $region26: #{tpu_custom_call.1} parent=1 // pred_check
      _
    $region27: #{tpu_custom_call.1} parent=1 // pred_check_branch
      %66 = sbr.rel (0) target = $region29
    $region28: #{tpu_custom_call.1} parent=1 // pred_region
      %67 = dma.done [#allocation3], 32
    $region29: #{tpu_custom_call.1} parent=1 // pred_fallthru
      _
    // Predicated region
    $region30: #{tpu_custom_call.1} parent=1 // pred_check
      _
    $region31: #{tpu_custom_call.1} parent=1 // pred_check_branch
      %69 = sbr.rel (0) target = $region33
    $region32: #{tpu_custom_call.1} parent=1 // pred_region
      %70 = dma.done [#allocation6], 256
    $region33: #{tpu_custom_call.1} parent=1 // pred_fallthru
      _
    // Predicated region
    $region34: #{tpu_custom_call.1} parent=1 // pred_check
      _
    $region35: #{tpu_custom_call.1} parent=1 // pred_check_branch
      %72 = sbr.rel (0) target = $region37
    $region36: #{tpu_custom_call.1} parent=1 // pred_region
      %73 = dma.done [#allocation6], 512
    $region37: #{tpu_custom_call.1} parent=1 // pred_fallthru
      _
    // Predicated region
    $region38: #{tpu_custom_call.1} parent=1 // pred_check
      _
    $region39: #{tpu_custom_call.1} parent=1 // pred_check_branch
      %75 = sbr.rel (0) target = $region41
    $region40: #{tpu_custom_call.1} parent=1 // pred_region
      %76 = dma.done [#allocation9], 512
    $region41: #{tpu_custom_call.1} parent=1 // pred_fallthru
      _
    %v77 = vld [vmem:[#allocation5] sm:$0xff]
    %v78 = vld [vmem:[#allocation5 + $0x8] sm:$0xff]
    %v79 = vld [vmem:[#allocation7] sm:$0xff]
    %v80 = vld [vmem:[#allocation7 + $0x8] sm:$0xff]
    %v81 = vld [vmem:[#allocation7 + $0x10] sm:$0xff]
    %v82 = vld [vmem:[#allocation7 + $0x18] sm:$0xff]
    %vm83 = vcmask 261120
    %v85 = vsel %vm83, %v77, 0
    %v88 = vsel %vm83, %v78, 0
    %90 = vmatprep.subr.mxu0 0.0
    %91 = vmatpush1.msra.mxu0 %v79
    %92 = vmatprep.subr.mxu0 0.0
    %93 = vmatpush1.msra.mxu0 %v80
    %94 = vmatprep.subr.mxu0 0.0
    %95 = vmatpush1.msra.mxu0 %v81
    %96 = vmatprep.subr.mxu0 0.0
    %97 = vmatpush1.msra.mxu0 %v82
    %98 = vmatprep.subr.mxu0 0.0
    %99 = vmatpush1.msra.mxu0 0.0
    %100 = vmatprep.subr.mxu0 0.0
    %101 = vmatpush1.msra.mxu0 0.0
    %102 = vmatprep.subr.mxu0 0.0
    %103 = vmatpush1.msra.mxu0 0.0
    %104 = vmatprep.subr.mxu0 0.0
    %105 = vmatpush1.msra.mxu0 0.0
    %106 = vmatprep.subr.mxu0 0.0
    %107 = vmatpush1.msra.mxu0 0.0
    %108 = vmatprep.subr.mxu0 0.0
    %109 = vmatpush1.msra.mxu0 0.0
    %110 = vmatprep.subr.mxu0 0.0
    %111 = vmatpush1.msra.mxu0 0.0
    %112 = vmatprep.subr.mxu0 0.0
    %113 = vmatpush1.msra.mxu0 0.0
    %114 = vmatprep.subr.mxu0 0.0
    %115 = vmatpush1.msra.mxu0 0.0
    %116 = vmatprep.subr.mxu0 0.0
    %117 = vmatpush1.msra.mxu0 0.0
    %118 = vmatprep.subr.mxu0 0.0
    %119 = vmatpush1.msra.mxu0 0.0
    %120 = vmatprep.subr.mxu0 0.0
    %121 = vmatpush1.msra.mxu0 0.0
    %122 = vmatprep.subr.mxu0 0.0
    %123 = vmatpush1.msra.mxu0 0.0
    %124 = vmatprep.subr.mxu0 0.0
    %125 = vmatpush1.msra.mxu0 0.0
    %126 = vmatprep.subr.mxu0 0.0
    %127 = vmatpush1.msra.mxu0 0.0
    %128 = vmatprep.subr.mxu0 0.0
    %129 = vmatpush1.msra.mxu0 0.0
    %130 = vmatprep.subr.mxu0 0.0
    %131 = vmatpush1.msra.mxu0 0.0
    %132 = vmatprep.subr.mxu0 0.0
    %133 = vmatpush1.msra.mxu0 0.0
    %134 = vmatprep.subr.mxu0 0.0
    %135 = vmatpush1.msra.mxu0 0.0
    %136 = vmatprep.subr.mxu0 0.0
    %137 = vmatpush1.msra.mxu0 0.0
    %138 = vmatprep.subr.mxu0 0.0
    %139 = vmatpush1.msra.mxu0 0.0
    %140 = vmatprep.subr.mxu0 0.0
    %141 = vmatpush1.msra.mxu0 0.0
    %142 = vmatprep.subr.mxu0 0.0
    %143 = vmatpush1.msra.mxu0 0.0
    %144 = vmatprep.subr.mxu0 0.0
    %145 = vmatpush1.msra.mxu0 0.0
    %146 = vmatprep.subr.mxu0 0.0
    %147 = vmatpush1.msra.mxu0 0.0
    %148 = vmatprep.subr.mxu0 0.0
    %149 = vmatpush1.msra.mxu0 0.0
    %150 = vmatprep.subr.mxu0 0.0
    %151 = vmatpush1.msra.mxu0 0.0
    %152 = vmatprep.subr.mxu0 0.0
    %153 = vmatpush1.msra.mxu0 0.0
    %154 = vmatprep.mubr.f32.mxu0 0.0
    %155 = vmatmul.mubr.f32.gmra.mrb[0].mxu0 %v85
    %v156 = vpop.f32.mrb[0].mxu0
    %v157 = vadd.f32 0.0, %v156
    %v158 = vpop.f32.mrb[0].mxu0
    %159 = vmatprep.mubr.f32.mxu0 0.0
    %160 = vmatmul.mubr.f32.gmra.mrb[0].mxu0 %v88
    %v161 = vpop.f32.mrb[0].mxu0
    %v162 = vadd.f32 0.0, %v161
    %v163 = vpop.f32.mrb[0].mxu0
    %164 = vdwg.mxu0
    %v165 = vld [vmem:[#allocation2] sm:$0x3]
    %v166 = vmul.f32 %v165, 0.05
    %v167 = vld [vmem:[#allocation8] sm:$0xff]
    %v168 = vld [vmem:[#allocation8 + $0x8] sm:$0xff]
    %v169 = vld [vmem:[#allocation8 + $0x10] sm:$0xff]
    %v170 = vld [vmem:[#allocation8 + $0x18] sm:$0xff]
    %v172 = vsel %vm83, %v166, 0
    %174 = vmatprep.subr.mxu0 0.0
    %175 = vmatpush1.msra.mxu0 %v167
    %176 = vmatprep.subr.mxu0 0.0
    %177 = vmatpush1.msra.mxu0 %v168
    %178 = vmatprep.subr.mxu0 0.0
    %179 = vmatpush1.msra.mxu0 %v169
    %180 = vmatprep.subr.mxu0 0.0
    %181 = vmatpush1.msra.mxu0 %v170
    %182 = vmatprep.subr.mxu0 0.0
    %183 = vmatpush1.msra.mxu0 0.0
    %184 = vmatprep.subr.mxu0 0.0
    %185 = vmatpush1.msra.mxu0 0.0
    %186 = vmatprep.subr.mxu0 0.0
    %187 = vmatpush1.msra.mxu0 0.0
    %188 = vmatprep.subr.mxu0 0.0
    %189 = vmatpush1.msra.mxu0 0.0
    %190 = vmatprep.subr.mxu0 0.0
    %191 = vmatpush1.msra.mxu0 0.0
    %192 = vmatprep.subr.mxu0 0.0
    %193 = vmatpush1.msra.mxu0 0.0
    %194 = vmatprep.subr.mxu0 0.0
    %195 = vmatpush1.msra.mxu0 0.0
    %196 = vmatprep.subr.mxu0 0.0
    %197 = vmatpush1.msra.mxu0 0.0
    %198 = vmatprep.subr.mxu0 0.0
    %199 = vmatpush1.msra.mxu0 0.0
    %200 = vmatprep.subr.mxu0 0.0
    %201 = vmatpush1.msra.mxu0 0.0
    %202 = vmatprep.subr.mxu0 0.0
    %203 = vmatpush1.msra.mxu0 0.0
    %204 = vmatprep.subr.mxu0 0.0
    %205 = vmatpush1.msra.mxu0 0.0
    %206 = vmatprep.subr.mxu0 0.0
    %207 = vmatpush1.msra.mxu0 0.0
    %208 = vmatprep.subr.mxu0 0.0
    %209 = vmatpush1.msra.mxu0 0.0
    %210 = vmatprep.subr.mxu0 0.0
    %211 = vmatpush1.msra.mxu0 0.0
    %212 = vmatprep.subr.mxu0 0.0
    %213 = vmatpush1.msra.mxu0 0.0
    %214 = vmatprep.subr.mxu0 0.0
    %215 = vmatpush1.msra.mxu0 0.0
    %216 = vmatprep.subr.mxu0 0.0
    %217 = vmatpush1.msra.mxu0 0.0
    %218 = vmatprep.subr.mxu0 0.0
    %219 = vmatpush1.msra.mxu0 0.0
    %220 = vmatprep.subr.mxu0 0.0
    %221 = vmatpush1.msra.mxu0 0.0
    %222 = vmatprep.subr.mxu0 0.0
    %223 = vmatpush1.msra.mxu0 0.0
    %224 = vmatprep.subr.mxu0 0.0
    %225 = vmatpush1.msra.mxu0 0.0
    %226 = vmatprep.subr.mxu0 0.0
    %227 = vmatpush1.msra.mxu0 0.0
    %228 = vmatprep.subr.mxu0 0.0
    %229 = vmatpush1.msra.mxu0 0.0
    %230 = vmatprep.subr.mxu0 0.0
    %231 = vmatpush1.msra.mxu0 0.0
    %232 = vmatprep.subr.mxu0 0.0
    %233 = vmatpush1.msra.mxu0 0.0
    %234 = vmatprep.subr.mxu0 0.0
    %235 = vmatpush1.msra.mxu0 0.0
    %236 = vmatprep.subr.mxu0 0.0
    %237 = vmatpush1.msra.mxu0 0.0
    %238 = vmatprep.mubr.f32.mxu0 0.0
    %239 = vmatmul.mubr.f32.gmra.mrb[0].mxu0 %v172
    %v240 = vpop.f32.mrb[0].mxu0
    %v241 = vadd.f32 0.0, %v240
    %v242 = vpop.f32.mrb[0].mxu0
    %243 = vdwg.mxu0
    %v246 = vunpack.c.l.s4 1966171168
    %v247 = vunpack.c.0.s8 %v246
    %v248 = vlaneseq
    %v249 = vshrl.u32 %v248, 7
    %v250 = vsub.s32 %v247, %v249
    %v251 = vrot.slane %v241, %v250
    %v252 = vcombine.high %v251, %v251
    %v254 = vunpack.c.l.s4 1966171168
    %v255 = vunpack.c.0.s8 %v254
    %v256 = vlaneseq
    %v257 = vshrl.u32 %v256, 7
    %v258 = vsub.s32 %v255, %v257
    %v259 = vrot.slane %v251, %v258
    %v261 = vunpack.c.l.s4 1966171168
    %v262 = vunpack.c.0.s8 %v261
    %v263 = vlaneseq
    %v264 = vshrl.u32 %v263, 7
    %v265 = vsub.s32 %v262, %v264
    %v266 = vrot.slane %v252, %v265
    %v267 = vlaneseq
    %v268 = vshrl.u32 %v267, 7
    %v269 = vsub.s32 0, %v268
    %v270 = vrot.slane %v259, %v269
    %v271 = vlaneseq
    %v272 = vshrl.u32 %v271, 7
    %v273 = vsub.s32 0, %v272
    %v274 = vrot.slane %v266, %v273
    %v277 = vadd.f32 %v157, %v270
    %v278 = vadd.f32 %v162, %v274
    %v279 = vtanh.pop %v277
    %v280 = vtanh.pop %v278
    %v281 = vld [vmem:[%s5] sm:$0x1]
    %v283 = vlaneseq
    %v284 = vshrl.u32 %v283, 7
    %v285 = vsub.s32 0, %v284
    %v286 = vrot.slane %v281, %v285
    %v288 = vmul.f32 %v279, %v286
    %v289 = vmul.f32 %v280, %v286
    %v290 = vsel %vm83, %v288, 0.0
    %291 = vadd.xlane.f32.xlu0 %v290
    %v292 = vpop.xlane.xlu0 %291
    %v293 = vsel %vm83, %v289, 0.0
    %294 = vadd.xlane.f32.xlu0 %v293
    %v295 = vpop.xlane.xlu0 %294
    %v296 = vld [vmem:[%s2] sm:$0x3]
    %vm297 = vcmp.ne.s32.totalorder %v296, 0
    %v300 = vlaneseq
    %v301 = vand.u32 %v300, 127
    %v302 = vlaneseq
    %v303 = vshrl.u32 %v302, 7
    %v304 = vsub.s32 %v301, %v303
    %v305 = vrot.slane %v292, %v304
    %v306 = vlaneseq
    %v307 = vshrl.u32 %v306, 7
    %v308 = vsub.s32 %v301, %v307
    %v309 = vrot.slane %v295, %v308
    %vm310 = vcmask 1041409
    %v311 = vsel %vm310, %v309, %v305
    %v313 = vsel %vm297, %v311, -103.27893
    %v314 = vmul.f32 %v313, 10.0
    %vm315 = vcmask 58368
    %v316 = vsel %vm315, %v314, -inf
    %317 = vmax.xlane.f32.xlu0 %v316
    %v318 = vpop.xlane.xlu0 %317
    %v319 = vsub.f32 %v314, %v318
    %v320 = vmul.f32 %v319, 1.442695
    %v321 = vpow.pop %v320
    %v322 = vsel %vm315, %v321, 0.0
    %323 = vadd.xlane.f32.xlu0 %v322
    %v324 = vpop.xlane.xlu0 %323
    %v325 = vrcp.pop %v324
    %v326 = vmul.f32 %v321, %v325
    %327 = vst.msk [vmem:[#allocation10] sm:$0x3] %vm315, %v326
    // Predicated region
    $region42: #{tpu_custom_call.1} parent=1 // pred_check
      _
    $region43: #{tpu_custom_call.1} parent=1 // pred_check_branch
      %329 = sbr.rel (0) target = $region45
    $region44: #{tpu_custom_call.1} parent=1 // pred_region
      %s331 = ssub.s32 32, 32
      %332 = vsyncadd [#allocation4], %s331
      %s334 = sshll.u32 [#allocation10], 4
      %s335 = int_to_ptr.vmem [resolvable:$true] %s334
      %337 = dma.vmem_to_hbm [thread:$0]  %s335, 32, %s6, [#allocation4]
    $region45: #{tpu_custom_call.1} parent=1 // pred_fallthru
      _
    // Predicated region
    $region46: #{tpu_custom_call.1} parent=1 // pred_check
      _
    $region47: #{tpu_custom_call.1} parent=1 // pred_check_branch
      %339 = sbr.rel (0) target = $region49
    $region48: #{tpu_custom_call.1} parent=1 // pred_region
      %340 = dma.done [#allocation4], 32
    $region49: #{tpu_custom_call.1} parent=1 // pred_fallthru
      _
    %341 = vsyncpa [#allocation3], 1
    %342 = vsyncpa [#allocation6], 1
    %343 = vsyncpa [#allocation9], 1
    %344 = vsyncpa [#allocation4], 1

</llo_original>
